<compile_context>
chip_gen: v7x
topology: tpu7x:2x2x1
jax: 0.10.0
libtpu: 0.0.40
codegen_flags: <defaults>
</compile_context>

<pallas_src>
import functools

import jax
import jax.numpy as jnp
from jax.experimental import pallas as pl
from jax.experimental.pallas import tpu as pltpu


def _layernorm1d_kernel(gamma_ref, bias_ref, x_ref, o_ref, *, eps):
    # x_ref block: (TB, C, TL). Reduction axis (C) is axis=1 and is always full.
    x = x_ref[...].astype(jnp.float32)
    mean = jnp.mean(x, axis=1, keepdims=True)                  # (TB, 1, TL)
    xc = x - mean                                              # reused below
    var = jnp.mean(xc * xc, axis=1, keepdims=True)             # (TB, 1, TL)
    inv_std = jax.lax.rsqrt(var + eps)                         # per-lane rsqrt (EUP)
    # Fold scalar gamma into the per-lane scale; bias added directly.
    scale = inv_std * gamma_ref[0]                             # (TB, 1, TL)
    o_ref[...] = (xc * scale + bias_ref[0]).astype(o_ref.dtype)


def _choose_tiles(B, C, L, itemsize, max_block_bytes=4 * 1024 * 1024):
    """Pick (TB, TL) so one block is <= ~4 MiB and TL is lane-dense."""
    lane_budget = max(1, max_block_bytes // max(1, C * itemsize))
    if lane_budget >= L:
        TL = L                                   # full length fits in one tile
    else:
        TL = max(128, (min(lane_budget, L) // 128) * 128)  # multiple of 128

    TB = 1
    if TL == L:
        # Pack batches to amortize per-grid-step overhead when (C, L) is small.
        per_batch = max(1, C * L * itemsize)
        cap = max(1, max_block_bytes // per_batch)
        for d in range(min(B, cap), 0, -1):
            if B % d == 0:
                TB = d
                break
    return TB, TL


def layernorm1d(x, gamma, bias, *, eps=1e-5):
    """Pallas TPU implementation of LayerNorm1d.forward (normalize over dim=-2)."""
    B, C, L = x.shape
    itemsize = jnp.dtype(x.dtype).itemsize
    TB, TL = _choose_tiles(B, C, L, itemsize)

    grid = (B // TB, pl.cdiv(L, TL))
    kernel = functools.partial(_layernorm1d_kernel, eps=eps)

    return pl.pallas_call(
        kernel,
        out_shape=jax.ShapeDtypeStruct((B, C, L), x.dtype),
        grid=grid,
        in_specs=[
            pl.BlockSpec(memory_space=pltpu.MemorySpace.SMEM),        # gamma (1,)
            pl.BlockSpec(memory_space=pltpu.MemorySpace.SMEM),        # bias  (1,)
            pl.BlockSpec((TB, C, TL), lambda b, l: (b, 0, l)),        # x
        ],
        out_specs=pl.BlockSpec((TB, C, TL), lambda b, l: (b, 0, l)),
        compiler_params=pltpu.CompilerParams(
            dimension_semantics=("parallel", "parallel"),
            vmem_limit_bytes=48 * 1024 * 1024,
        ),
    )(gamma, bias, x)


def _reference(x, gamma, bias, *, eps=1e-5):
    xf = x.astype(jnp.float32)
    mean = jnp.mean(xf, axis=-2, keepdims=True)
    var = jnp.mean(jnp.square(xf - mean), axis=-2, keepdims=True)
    out = (xf - mean) / jnp.sqrt(var + eps) * gamma[0] + bias[0]
    return out.astype(x.dtype)


if __name__ == "__main__":
    key = jax.random.PRNGKey(0)

    # Deterministic parameter init (matches nn.Parameter(torch.tensor([1.0])/[0.0])).
    gamma = jnp.array([1.0], dtype=jnp.float32)
    bias = jnp.array([0.0], dtype=jnp.float32)

    # Small shapes consistent with the module's NCL input.
    k1, k2 = jax.random.split(key)
    test_shapes = [(2, 8, 128), (3, 16, 384)]
    keys = [k1, k2]

    for shp, kk in zip(test_shapes, keys):
        x = jax.random.normal(kk, shp, dtype=jnp.float32) * 2.0 + 0.5
        out = layernorm1d(x, gamma, bias, eps=1e-5)
        out = jax.block_until_ready(out)
        ref = _reference(x, gamma, bias, eps=1e-5)
        assert out.shape == x.shape and out.dtype == x.dtype
        assert jnp.allclose(out, ref, atol=1e-5, rtol=1e-5)

    print("KERNEL_OK")
</pallas_src>

<mosaic_0001>
module attributes {stable_mosaic.version = 11 : i64} {
  func.func @_layernorm1d_kernel(%arg0: i32, %arg1: i32, %arg2: memref<1xf32, #tpu.memory_space<smem>>, %arg3: memref<1xf32, #tpu.memory_space<smem>>, %arg4: memref<2x8x128xf32, #tpu.memory_space<vmem>>, %arg5: memref<2x8x128xf32, #tpu.memory_space<vmem>>) attributes {dimension_semantics = [#tpu.dimension_semantics<parallel>, #tpu.dimension_semantics<parallel>], iteration_bounds = array<i64: 1, 1>, scalar_prefetch = 0 : i64, scratch_operands = 0 : i64, tpu.core_type = #tpu.core_type<tc>, window_params = [{transform_indices = @transform_0, window_bounds = array<i64: 1>}, {transform_indices = @transform_1, window_bounds = array<i64: 1>}, {transform_indices = @transform_2, window_bounds = array<i64: 2, 8, 128>}, {transform_indices = @transform_3, window_bounds = array<i64: 2, 8, 128>}]} {
    %c0 = arith.constant 0 : index
    %c0_0 = arith.constant 0 : index
    %c0_1 = arith.constant 0 : index
    %0 = vector.load %arg4[%c0, %c0_0, %c0_1] : memref<2x8x128xf32, #tpu.memory_space<vmem>>, vector<2x8x128xf32>
    %cst = arith.constant dense<0.000000e+00> : vector<2x128xf32>
    %1 = vector.multi_reduction <add>, %0, %cst [1] : vector<2x8x128xf32> to vector<2x128xf32>
    %2 = vector.shape_cast %1 : vector<2x128xf32> to vector<2x1x128xf32>
    %cst_2 = arith.constant 8.000000e+00 : f32
    %3 = vector.broadcast %cst_2 : f32 to vector<2x1x128xf32>
    %4 = arith.divf %2, %3 : vector<2x1x128xf32>
    %5 = vector.broadcast %4 : vector<2x1x128xf32> to vector<2x8x128xf32>
    %6 = arith.subf %0, %5 : vector<2x8x128xf32>
    %7 = arith.mulf %6, %6 : vector<2x8x128xf32>
    %cst_3 = arith.constant dense<0.000000e+00> : vector<2x128xf32>
    %8 = vector.multi_reduction <add>, %7, %cst_3 [1] : vector<2x8x128xf32> to vector<2x128xf32>
    %9 = vector.shape_cast %8 : vector<2x128xf32> to vector<2x1x128xf32>
    %cst_4 = arith.constant 8.000000e+00 : f32
    %10 = vector.broadcast %cst_4 : f32 to vector<2x1x128xf32>
    %11 = arith.divf %9, %10 : vector<2x1x128xf32>
    %cst_5 = arith.constant 9.99999974E-6 : f32
    %12 = vector.broadcast %cst_5 : f32 to vector<2x1x128xf32>
    %13 = arith.addf %11, %12 : vector<2x1x128xf32>
    %14 = math.rsqrt %13 : vector<2x1x128xf32>
    %c0_6 = arith.constant 0 : index
    %15 = memref.load %arg2[%c0_6] : memref<1xf32, #tpu.memory_space<smem>>
    %16 = vector.broadcast %15 : f32 to vector<2x1x128xf32>
    %17 = arith.mulf %14, %16 : vector<2x1x128xf32>
    %18 = vector.broadcast %17 : vector<2x1x128xf32> to vector<2x8x128xf32>
    %19 = arith.mulf %6, %18 : vector<2x8x128xf32>
    %c0_7 = arith.constant 0 : index
    %20 = memref.load %arg3[%c0_7] : memref<1xf32, #tpu.memory_space<smem>>
    %21 = vector.broadcast %20 : f32 to vector<2x8x128xf32>
    %22 = arith.addf %19, %21 : vector<2x8x128xf32>
    %c0_8 = arith.constant 0 : index
    %c0_9 = arith.constant 0 : index
    %c0_10 = arith.constant 0 : index
    %23 = vector.load %arg5[%c0_8, %c0_9, %c0_10] : memref<2x8x128xf32, #tpu.memory_space<vmem>>, vector<2x8x128xf32>
    tpu.vector_store %arg5[%c0_8, %c0_9, %c0_10], %22 {strides = array<i32>} : memref<2x8x128xf32, #tpu.memory_space<vmem>>, vector<2x8x128xf32>,
    return
  }
  func.func @transform_0(%arg0: i32, %arg1: i32) -> i32 {
    %c0_i32 = arith.constant 0 : i32
    %c0_i32_0 = arith.constant 0 : i32
    return %c0_i32 : i32
  }
  func.func @transform_1(%arg0: i32, %arg1: i32) -> i32 {
    %c0_i32 = arith.constant 0 : i32
    %c0_i32_0 = arith.constant 0 : i32
    return %c0_i32 : i32
  }
  func.func @transform_2(%arg0: i32, %arg1: i32) -> (i32, i32, i32) {
    %c0_i32 = arith.constant 0 : i32
    %c0_i32_0 = arith.constant 0 : i32
    return %arg0, %c0_i32, %arg1 : i32, i32, i32
  }
  func.func @transform_3(%arg0: i32, %arg1: i32) -> (i32, i32, i32) {
    %c0_i32 = arith.constant 0 : i32
    %c0_i32_0 = arith.constant 0 : i32
    return %arg0, %c0_i32, %arg1 : i32, i32, i32
  }
}

</mosaic_0001>

<llo_original>
// kernel: tpu_custom_call.1
$region0: #{tpu_custom_call.1}
  #allocation0 [shape = 'u32[]', space=smem, size = 0x4, offset = 0x4, fixed_abs, tag = 'smem constant byte address 0x4 - core index']
  #allocation1 [shape = 'u32[144,128]{1,0:T(1,128)}', space=vmem, size = 0x12000, scoped, tag = 'internal scratch']
  #allocation2 [shape = 'f32[1]{0:T(128)S(6)}', space=smem, size = 0x200, scoped, tag = 'scoped memory for tpu_custom_call.1']
  #allocation3 [shape = 'f32[1]{0:T(128)S(6)}', space=smem, size = 0x200, scoped, tag = 'scoped memory for tpu_custom_call.1']
  %s0 = inlined_call_operand.<no memory space> [shape: f32[1], index: 0, kind: input, shape index: {}]
  %s1 = inlined_call_operand.<no memory space> [shape: f32[1], index: 1, kind: input, shape index: {}]
  %s2 = inlined_call_operand.hbm [shape: f32[2,8,128], index: 2, kind: input, shape index: {}]
  %s3 = inlined_call_operand.hbm [shape: f32[2,8,128], index: 3, kind: output, shape index: {}]
  %s4 = sld [smem:[#allocation0]]
  $region26: #{tpu_custom_call.1} parent=0
    _
  %s6 = ssub.s32 1, %s4
  %s7 = scalar_select 0, %s6, %s4
  %8 = sst [smem:[#allocation2]] %s0
  %9 = sst [smem:[#allocation3]] %s1
  $region1: #{tpu_custom_call.1} parent=0
    #allocation4 [shape = 'u8[8192]{0}', space=vmem, size = 0x2000, scoped, tag = 'input window, operand 2, single buffered']
    #allocation5 [shape = 's32[1]{0}', space=sflag, size = 0x4, scoped, tag = 'scoped memory for tpu_custom_call.1']
    #allocation6 [shape = 's32[1]{0}', space=sflag, size = 0x4, scoped, tag = 'scoped memory for tpu_custom_call.1']
    #allocation7 [shape = 'u8[8192]{0}', space=vmem, size = 0x2000, scoped, tag = 'output window, operand 0, single buffered']
    %10 = vsyncpa [#allocation5], 0
    %11 = vsyncpa [#allocation6], 0
    // Predicated region
    $region2: #{tpu_custom_call.1} parent=1 // pred_check
      _
    $region3: #{tpu_custom_call.1} parent=1 // pred_check_branch
      %13 = sbr.rel (0) target = $region5
    $region4: #{tpu_custom_call.1} parent=1 // pred_region
      _
    $region5: #{tpu_custom_call.1} parent=1 // pred_fallthru
      _
    // Predicated region
    $region6: #{tpu_custom_call.1} parent=1 // pred_check
      _
    $region7: #{tpu_custom_call.1} parent=1 // pred_check_branch
      %15 = sbr.rel (0) target = $region9
    $region8: #{tpu_custom_call.1} parent=1 // pred_region
      _
    $region9: #{tpu_custom_call.1} parent=1 // pred_fallthru
      _
    // Predicated region
    $region10: #{tpu_custom_call.1} parent=1 // pred_check
      _
    $region11: #{tpu_custom_call.1} parent=1 // pred_check_branch
      %17 = sbr.rel (0) target = $region13
    $region12: #{tpu_custom_call.1} parent=1 // pred_region
      %s19 = ssub.s32 256, 256
      %20 = vsyncadd [#allocation5], %s19
      %s21 = sshll.u32 [#allocation4], 4
      %s22 = int_to_ptr.vmem [resolvable:$true] %s21
      %27 = dma.hbm_to_vmem [thread:$0]  %s2, 256, %s22, [#allocation5], 128, 128, 8
    $region13: #{tpu_custom_call.1} parent=1 // pred_fallthru
      _
    // Predicated region
    $region14: #{tpu_custom_call.1} parent=1 // pred_check
      _
    $region15: #{tpu_custom_call.1} parent=1 // pred_check_branch
      %29 = sbr.rel (0) target = $region17
    $region16: #{tpu_custom_call.1} parent=1 // pred_region
      %30 = dma.done [#allocation5], 256
    $region17: #{tpu_custom_call.1} parent=1 // pred_fallthru
      _
    %v31 = vld [vmem:[#allocation4] sm:$0xff]
    %v32 = vld [vmem:[#allocation4 + $0x8] sm:$0xff]
    %v33 = vrot.slane %v31, 4
    %v34 = vadd.f32 %v31, %v33
    %v35 = vrot.slane %v34, 2
    %v36 = vadd.f32 %v34, %v35
    %v37 = vrot.slane %v36, 1
    %v38 = vadd.f32 %v36, %v37
    %v39 = vrot.slane %v32, 4
    %v40 = vadd.f32 %v32, %v39
    %v41 = vrot.slane %v40, 2
    %v42 = vadd.f32 %v40, %v41
    %v43 = vrot.slane %v42, 1
    %v44 = vadd.f32 %v42, %v43
    %v45 = vrcp.pop 8.0
    %v46 = vmul.f32 %v38, %v45
    %v47 = vmul.f32 %v44, %v45
    %v48 = vsub.f32 %v31, %v46
    %v49 = vsub.f32 %v32, %v47
    %v50 = vmul.f32 %v48, %v48
    %v51 = vmul.f32 %v49, %v49
    %v52 = vrot.slane %v50, 4
    %v53 = vadd.f32 %v50, %v52
    %v54 = vrot.slane %v53, 2
    %v55 = vadd.f32 %v53, %v54
    %v56 = vrot.slane %v55, 1
    %v57 = vadd.f32 %v55, %v56
    %v58 = vrot.slane %v51, 4
    %v59 = vadd.f32 %v51, %v58
    %v60 = vrot.slane %v59, 2
    %v61 = vadd.f32 %v59, %v60
    %v62 = vrot.slane %v61, 1
    %v63 = vadd.f32 %v61, %v62
    %v64 = vmul.f32 %v57, %v45
    %v65 = vmul.f32 %v63, %v45
    %v66 = vadd.f32 %v64, 1e-05
    %v67 = vadd.f32 %v65, 1e-05
    %v68 = vrsqrt.pop %v66
    %v69 = vrsqrt.pop %v67
    %s70 = sld [smem:[#allocation2]]
    %v71 = vstv %s70
    %v72 = vmul.f32 %v68, %v71
    %v73 = vmul.f32 %v69, %v71
    %v74 = vmul.f32 %v48, %v72
    %v75 = vmul.f32 %v49, %v73
    %s76 = sld [smem:[#allocation3]]
    %v77 = vstv %s76
    %v78 = vadd.f32 %v74, %v77
    %v79 = vadd.f32 %v75, %v77
    %80 = vst [vmem:[#allocation7] sm:$0xff] %v78
    %81 = vst [vmem:[#allocation7 + $0x8] sm:$0xff] %v79
    // Predicated region
    $region18: #{tpu_custom_call.1} parent=1 // pred_check
      _
    $region19: #{tpu_custom_call.1} parent=1 // pred_check_branch
      %83 = sbr.rel (0) target = $region21
    $region20: #{tpu_custom_call.1} parent=1 // pred_region
      %s85 = ssub.s32 256, 256
      %86 = vsyncadd [#allocation6], %s85
      %s87 = sshll.u32 [#allocation7], 4
      %s88 = int_to_ptr.vmem [resolvable:$true] %s87
      %93 = dma.vmem_to_hbm [thread:$0]  %s88, 256, %s3, [#allocation6], 128, 128, 8
    $region21: #{tpu_custom_call.1} parent=1 // pred_fallthru
      _
    // Predicated region
    $region22: #{tpu_custom_call.1} parent=1 // pred_check
      _
    $region23: #{tpu_custom_call.1} parent=1 // pred_check_branch
      %95 = sbr.rel (0) target = $region25
    $region24: #{tpu_custom_call.1} parent=1 // pred_region
      %96 = dma.done [#allocation6], 256
    $region25: #{tpu_custom_call.1} parent=1 // pred_fallthru
      _
    %97 = vsyncpa [#allocation5], 1
    %98 = vsyncpa [#allocation6], 1

</llo_original>
